<compile_context>
chip_gen: v6e
topology: v6e:2x2x1
jax: 0.10.0
libtpu: 0.0.40
codegen_flags: <defaults>
</compile_context>

<pallas_src>
import jax
import jax.numpy as jnp
from jax.experimental import pallas as pl
from jax.experimental.pallas import tpu as pltpu

_LANES = 128


def _plane_kernel(bias_ref, x_ref, m_ref, o_ref):
    # bias_ref: SMEM (1,) f32                  -> plane[3] / ||plane[:3]||
    # x_ref:    VMEM (1, th, 3*tw)             -> xyz-interleaved point block
    # m_ref:    VMEM (3*tw, tw) f32            -> de-interleave/plane matrix
    # o_ref:    VMEM (1, tw, th)               -> transposed result block
    x = x_ref[0].astype(jnp.float32)                                   # (th, 3*tw)
    res = jnp.dot(x, m_ref[...], preferred_element_type=jnp.float32)  # (th, tw)
    res = jnp.transpose(res) + bias_ref[0]                            # (tw, th) via XLU
    o_ref[0] = res.astype(o_ref.dtype)


def plane_res_layer(points, plane, out_height, out_width):
    """Pallas implementation of PlaneResLayer.forward.

    points: (B, C, Hp, 3) with C * Hp == out_height * out_width
    plane:  (4,)
    returns: (B, 1, out_width, out_height), dtype of `points`
    """
    B, C, Hp, xyz = points.shape
    assert xyz == 3, "last axis of points must be xyz (size 3)"
    h, w = int(out_height), int(out_width)
    assert C * Hp == h * w, "view() size mismatch"
    itemsize = jnp.dtype(points.dtype).itemsize

    # Free row-major reinterpretation (no data movement): (B,C,Hp,3) -> (B,h,3w)
    x = points.reshape(B, h, 3 * w)

    # ---- tile sizes ---------------------------------------------------------
    # Column tile: <=128 image columns per step -> matmul K = 3*tw <= 384,
    # keeping the de-interleave matmul bandwidth-bound, not MXU-bound.
    tw = w if w <= _LANES else _LANES
    # Row tile: full image height when small, else multiples of 128 rows up to
    # 2048 (2048 x 384 lanes x 4B ~= 3 MiB input block: amortizes per-step
    # overhead, safe double-buffered inside v7x's 64 MiB physical VMEM).
    max_th = 2048
    th = h if h <= max_th else min((h // _LANES) * _LANES, max_th)
    nh = pl.cdiv(h, th)
    nw = pl.cdiv(w, tw)

    # ---- scalar bias + de-interleave matrix (hoisted out of the kernel) ------
    abc = plane[0:3].astype(jnp.float32)
    bias = (plane[3].astype(jnp.float32) / jnp.sqrt(jnp.sum(abc * abc)))[None]
    # M[3p + j, q] = abc[j] * (p == q)  =>  (x_blk @ M)[r, q] = a*x + b*y + c*z
    eye = jnp.eye(tw, dtype=jnp.float32)
    m = (eye[:, None, :] * abc[None, :, None]).reshape(3 * tw, tw)

    in_block = th * 3 * tw * itemsize
    out_block = tw * th * itemsize
    m_bytes = 3 * tw * tw * 4
    vmem_limit = int(min(48 << 20,
                         max(32 << 20, 3 * (in_block + out_block + m_bytes))))

    out = pl.pallas_call(
        _plane_kernel,
        out_shape=jax.ShapeDtypeStruct((B, w, h), points.dtype),
        grid=(B, nh, nw),
        in_specs=[
            pl.BlockSpec(memory_space=pltpu.MemorySpace.SMEM),           # bias
            pl.BlockSpec((1, th, 3 * tw), lambda b, i, j: (b, i, j)),    # points
            pl.BlockSpec((3 * tw, tw), lambda b, i, j: (0, 0)),          # M (resident)
        ],
        out_specs=pl.BlockSpec((1, tw, th), lambda b, i, j: (b, j, i)),  # transposed
        compiler_params=pltpu.CompilerParams(
            dimension_semantics=("parallel", "parallel", "parallel"),
            vmem_limit_bytes=vmem_limit),
    )(bias, x, m)

    # permute(0,1,3,2) already done inside the kernel; only add the singleton
    # channel dim (metadata-only reshape).
    return out.reshape(B, 1, w, h)


def _ref_plane_res_layer(points, plane, out_height, out_width):
    abc = plane[0:3]
    res = (points[..., 0] * abc[0] + points[..., 1] * abc[1]
           + points[..., 2] * abc[2]
           + plane[3] / jnp.sqrt(jnp.sum(abc * abc)))
    B = points.shape[0]
    res = res.reshape(B, 1, out_height, out_width)
    return jnp.transpose(res, (0, 1, 3, 2))


if __name__ == "__main__":
    key = jax.random.PRNGKey(0)
    k_plane, k_points = jax.random.split(key)

    batch, channels, out_h, out_w = 2, 4, 16, 16
    hp = (out_h * out_w) // channels
    # Deterministic "torch.rand(4)"-style plane parameter (uniform [0,1)).
    plane = jax.random.uniform(k_plane, (4,), dtype=jnp.float32)
    # points: (B, C, Hp, 3) with C*Hp == out_h*out_w (as .view() requires).
    points = jax.random.uniform(k_points, (batch, channels, hp, 3),
                                dtype=jnp.float32)

    fwd = jax.jit(plane_res_layer, static_argnums=(2, 3))
    out = fwd(points, plane, out_h, out_w)
    out = jax.block_until_ready(out)

    ref = _ref_plane_res_layer(points, plane, out_h, out_w)
    assert out.shape == (batch, 1, out_w, out_h), out.shape
    # MXU f32 (multi-pass bf16) vs exact VALU reference: allow 1e-4.
    assert jnp.allclose(out, ref, atol=1e-4, rtol=1e-4), float(
        jnp.max(jnp.abs(out - ref)))

    print("KERNEL_OK")
</pallas_src>

<mosaic_0001>
module attributes {stable_mosaic.version = 11 : i64} {
  func.func @_plane_kernel(%arg0: i32, %arg1: i32, %arg2: i32, %arg3: memref<1xf32, #tpu.memory_space<smem>>, %arg4: memref<1x16x48xf32, #tpu.memory_space<vmem>>, %arg5: memref<48x16xf32, #tpu.memory_space<vmem>>, %arg6: memref<1x16x16xf32, #tpu.memory_space<vmem>>) attributes {dimension_semantics = [#tpu.dimension_semantics<parallel>, #tpu.dimension_semantics<parallel>, #tpu.dimension_semantics<parallel>], iteration_bounds = array<i64: 2, 1, 1>, scalar_prefetch = 0 : i64, scratch_operands = 0 : i64, tpu.core_type = #tpu.core_type<tc>, window_params = [{transform_indices = @transform_0, window_bounds = array<i64: 1>}, {transform_indices = @transform_1, window_bounds = array<i64: 1, 16, 48>}, {pipeline_mode = #tpu.pipeline_mode<synchronous>, transform_indices = @transform_2, window_bounds = array<i64: 48, 16>}, {transform_indices = @transform_3, window_bounds = array<i64: 1, 16, 16>}]} {
    %c0 = arith.constant 0 : index
    %c0_0 = arith.constant 0 : index
    %c0_1 = arith.constant 0 : index
    %0 = vector.load %arg4[%c0, %c0_0, %c0_1] : memref<1x16x48xf32, #tpu.memory_space<vmem>>, vector<1x16x48xf32>
    %1 = vector.shape_cast %0 : vector<1x16x48xf32> to vector<16x48xf32>
    %c0_2 = arith.constant 0 : index
    %c0_3 = arith.constant 0 : index
    %2 = vector.load %arg5[%c0_2, %c0_3] : memref<48x16xf32, #tpu.memory_space<vmem>>, vector<48x16xf32>
    %cst = arith.constant dense<0.000000e+00> : vector<16x16xf32>
    %3 = tpu.matmul %1, %2, %cst {dimension_numbers = #tpu.dot_dimension_numbers<[1], [0], [0], [1], [0, 0, 1, 1], [], []>} : vector<16x48xf32>, vector<48x16xf32>, vector<16x16xf32> -> vector<16x16xf32>
    %4 = tpu.transpose %3, [1, 0] : vector<16x16xf32> -> vector<16x16xf32>
    %c0_4 = arith.constant 0 : index
    %5 = memref.load %arg3[%c0_4] : memref<1xf32, #tpu.memory_space<smem>>
    %6 = vector.broadcast %5 : f32 to vector<16x16xf32>
    %7 = arith.addf %4, %6 : vector<16x16xf32>
    %c0_5 = arith.constant 0 : index
    %c0_6 = arith.constant 0 : index
    %c0_7 = arith.constant 0 : index
    %8 = vector.load %arg6[%c0_5, %c0_6, %c0_7] : memref<1x16x16xf32, #tpu.memory_space<vmem>>, vector<1x16x16xf32>
    %9 = vector.shape_cast %8 : vector<1x16x16xf32> to vector<16x16xf32>
    %10 = vector.shape_cast %7 : vector<16x16xf32> to vector<1x16x16xf32>
    tpu.vector_store %arg6[%c0_5, %c0_6, %c0_7], %10 {strides = array<i32>} : memref<1x16x16xf32, #tpu.memory_space<vmem>>, vector<1x16x16xf32>,
    return
  }
  func.func @transform_0(%arg0: i32, %arg1: i32, %arg2: i32) -> i32 {
    %c0_i32 = arith.constant 0 : i32
    %c0_i32_0 = arith.constant 0 : i32
    return %c0_i32 : i32
  }
  func.func @transform_1(%arg0: i32, %arg1: i32, %arg2: i32) -> (i32, i32, i32) {
    %c0_i32 = arith.constant 0 : i32
    return %arg0, %arg1, %arg2 : i32, i32, i32
  }
  func.func @transform_2(%arg0: i32, %arg1: i32, %arg2: i32) -> (i32, i32) {
    %c0_i32 = arith.constant 0 : i32
    %c0_i32_0 = arith.constant 0 : i32
    %c0_i32_1 = arith.constant 0 : i32
    return %c0_i32, %c0_i32_0 : i32, i32
  }
  func.func @transform_3(%arg0: i32, %arg1: i32, %arg2: i32) -> (i32, i32, i32) {
    %c0_i32 = arith.constant 0 : i32
    return %arg0, %arg2, %arg1 : i32, i32, i32
  }
}

</mosaic_0001>

<llo_original>
// kernel: plane_res_layer.1
$region0: #{plane_res_layer.1}
  #allocation0 [shape = 'u32[]', space=smem, size = 0x4, offset = 0x4, fixed_abs, tag = 'smem constant byte address 0x4 - core index']
  #allocation1 [shape = 'u32[144,128]{1,0:T(1,128)}', space=vmem, size = 0x12000, scoped, tag = 'internal scratch']
  #allocation2 [shape = 'f32[1]{0:T(128)S(6)}', space=smem, size = 0x200, scoped, tag = 'scoped memory for plane_res_layer.1']
  %s0 = inlined_call_operand.<no memory space> [shape: f32[1], index: 0, kind: input, shape index: {}]
  %s1 = inlined_call_operand.vmem [shape: f32[2,16,48], index: 1, kind: input, shape index: {}]
  %s2 = inlined_call_operand.vmem [shape: f32[48,16], index: 2, kind: input, shape index: {}]
  %s3 = inlined_call_operand.hbm [shape: f32[2,16,16], index: 3, kind: output, shape index: {}]
  %s4 = sld [smem:[#allocation0]]
  $region45: #{plane_res_layer.1} parent=0
    _
  %s6 = ssub.s32 1, %s4
  %s7 = scalar_select 0, %s6, %s4
  %8 = sst [smem:[#allocation2]] %s0
  $region1: #{plane_res_layer.1} parent=0
    #allocation3 [shape = 'u8[16384]{0}', space=vmem, size = 0x4000, scoped, tag = 'output window, operand 0']
    #allocation4 [shape = 's32[2]{0}', space=sflag, size = 0x8, scoped, tag = 'scoped memory for plane_res_layer.1']
    %9 = vsyncpa [#allocation4], 0
    %s10 = scalar_lea.sflag [#allocation4], 1
    %11 = vsyncpa %s10, 0
    loop: start=0, step=1, limit=4
    $region2: #{plane_res_layer.1} parent=1 // loop_pre_header
      _
    $region3: #{plane_res_layer.1} parent=1 // loop_header
      %s13 = sphi 0, %s17
      %p14 = scmp.ge.s32.totalorder %s13, 4
      %s20 = sphi 0, %s39
      %s21 = sphi 0, %s35
      %s22 = sphi 0, %s31
      %s23 = sphi 0, %s20
      %s24 = sphi 0, %s21
      %s25 = sphi 0, %s22
      %s26 = sphi 0, %s23
      %s27 = sphi 0, %s24
      %s28 = sphi 0, %s25
      %s40 = sphi 0, %s40
      %s42 = sphi 0, %s40
      %s43 = sphi 0, %s42
      %s57 = sphi 0, %s43
      %s67 = sphi 0, %s69
      %s70 = sphi 0, %s67
      %s71 = sphi 0, %s70
      %s87 = sphi 0, %s71
      %s91 = sphi 0, %s91
      %s93 = sphi 0, %s91
      %s94 = sphi 0, %s93
      %s108 = sphi 0, %s94
      %s118 = sphi 0, %s120
      %s121 = sphi 0, %s118
      %s122 = sphi 0, %s121
      %s138 = sphi 0, %s122
    $region4: #{plane_res_layer.1} parent=1 // loop_header_branch
      %16 = sbr.rel (%p14) target = $region8
    $region5: #{plane_res_layer.1} parent=1 // loop_body
      %s18 = ssub.s32 %s13, 1
      %s19 = ssub.s32 %s13, 2
      %s29 = sadd.s32 1, %s22
      %p30 = scmp.ge.s32.totalorder %s29, 1
      %s31 = scalar_select %p30, 0, %s29
      %s32 = sadd.s32 1, %s21
      %s33 = scalar_select %p30, %s32, %s21
      %p34 = scmp.ge.s32.totalorder %s33, 1
      %s35 = scalar_select %p34, 0, %s33
      %s36 = sadd.s32 1, %s20
      %s37 = scalar_select %p34, %s36, %s20
      %p38 = scmp.ge.s32.totalorder %s37, 2
      %s39 = scalar_select %p38, 0, %s37
      %s41 = sadd.s32 %s40, 1
      %p44 = scmp.eq.s32.totalorder %s13, 1
      %p45 = scmp.ne.s32.totalorder %s40, %s42
      %p46 = scmp.eq.s32.totalorder %s13, 0
      %p47 = por %p45, %p46
      %p48 = scmp.ne.s32.totalorder %s40, %s42
      %p49 = scmp.eq.s32.totalorder %s18, 1
      %p50 = por %p48, %p49
      %p51 = scmp.ne.s32.totalorder %s42, %s43
      %p52 = scmp.eq.s32.totalorder %s18, 0
      %p53 = por %p51, %p52
      %p54 = scmp.ne.s32.totalorder %s42, %s43
      %p55 = scmp.eq.s32.totalorder %s19, 1
      %p56 = por %p54, %p55
      %p58 = scmp.ne.s32.totalorder %s43, %s57
      %p59 = scmp.eq.s32.totalorder %s19, 0
      %p60 = por %p58, %p59
      %s61 = ssub.s32 %s20, %s39
      %s62 = ssub.s32 %s21, %s35
      %s63 = sor.u32 %s61, %s62
      %s64 = ssub.s32 %s22, %s31
      %s65 = sor.u32 %s63, %s64
      %p66 = scmp.eq.s32.totalorder %s65, 0
      %s68 = sadd.s32 %s67, 1
      %s69 = scalar_select %p66, %s67, %s68
      %p72 = pneg %p66
      %p73 = scmp.eq.s32.totalorder %s13, 1
      %p74 = por %p72, %p73
      %p75 = scmp.ne.s32.totalorder %s67, %s70
      %p76 = scmp.eq.s32.totalorder %s13, 0
      %p77 = por %p75, %p76
      %p78 = scmp.ne.s32.totalorder %s67, %s70
      %p79 = scmp.eq.s32.totalorder %s18, 1
      %p80 = por %p78, %p79
      %p81 = scmp.ne.s32.totalorder %s70, %s71
      %p82 = scmp.eq.s32.totalorder %s18, 0
      %p83 = por %p81, %p82
      %p84 = scmp.ne.s32.totalorder %s70, %s71
      %p85 = scmp.eq.s32.totalorder %s19, 1
      %p86 = por %p84, %p85
      %p88 = scmp.ne.s32.totalorder %s71, %s87
      %p89 = scmp.eq.s32.totalorder %s19, 0
      %p90 = por %p88, %p89
      %s92 = sadd.s32 %s91, 1
      %p95 = scmp.eq.s32.totalorder %s13, 1
      %p96 = scmp.ne.s32.totalorder %s91, %s93
      %p97 = scmp.eq.s32.totalorder %s13, 0
      %p98 = por %p96, %p97
      %p99 = scmp.ne.s32.totalorder %s91, %s93
      %p100 = scmp.eq.s32.totalorder %s18, 1
      %p101 = por %p99, %p100
      %p102 = scmp.ne.s32.totalorder %s93, %s94
      %p103 = scmp.eq.s32.totalorder %s18, 0
      %p104 = por %p102, %p103
      %p105 = scmp.ne.s32.totalorder %s93, %s94
      %p106 = scmp.eq.s32.totalorder %s19, 1
      %p107 = por %p105, %p106
      %p109 = scmp.ne.s32.totalorder %s94, %s108
      %p110 = scmp.eq.s32.totalorder %s19, 0
      %p111 = por %p109, %p110
      %s112 = ssub.s32 %s20, %s39
      %s113 = ssub.s32 %s22, %s31
      %s114 = sor.u32 %s112, %s113
      %s115 = ssub.s32 %s21, %s35
      %s116 = sor.u32 %s114, %s115
      %p117 = scmp.eq.s32.totalorder %s116, 0
      %s119 = sadd.s32 %s118, 1
      %s120 = scalar_select %p117, %s118, %s119
      %p123 = pneg %p117
      %p124 = scmp.eq.s32.totalorder %s13, 1
      %p125 = por %p123, %p124
      %p126 = scmp.ne.s32.totalorder %s118, %s121
      %p127 = scmp.eq.s32.totalorder %s13, 0
      %p128 = por %p126, %p127
      %p129 = scmp.ne.s32.totalorder %s118, %s121
      %p130 = scmp.eq.s32.totalorder %s18, 1
      %p131 = por %p129, %p130
      %p132 = scmp.ne.s32.totalorder %s121, %s122
      %p133 = scmp.eq.s32.totalorder %s18, 0
      %p134 = por %p132, %p133
      %p135 = scmp.ne.s32.totalorder %s121, %s122
      %p136 = scmp.eq.s32.totalorder %s19, 1
      %p137 = por %p135, %p136
      %p139 = scmp.ne.s32.totalorder %s122, %s138
      %p140 = scmp.eq.s32.totalorder %s19, 0
      %p141 = por %p139, %p140
      %p142 = scmp.le.s32.totalorder 1, %s13
      %p143 = scmp.lt.s32.totalorder %s13, 3
      %p144 = pnand %p142, %p143
      %p145 = pneg %p144
      // Predicated region
      $region9: #{plane_res_layer.1} parent=5 // pred_check
        _
      $region10: #{plane_res_layer.1} parent=5 // pred_check_branch
        %147 = sbr.rel (%p144) target = $region12
      $region11: #{plane_res_layer.1} parent=5 // pred_region
        %s148 = ssub.s32 %s13, 1
        // Predicated region
        $region13: #{plane_res_layer.1} parent=11 // pred_check
          %p149 = pneg %p53
        $region14: #{plane_res_layer.1} parent=11 // pred_check_branch
          %151 = sbr.rel (%p149) target = $region16
        $region15: #{plane_res_layer.1} parent=11 // pred_region
          _
        $region16: #{plane_res_layer.1} parent=11 // pred_fallthru
          _
        // Predicated region
        $region17: #{plane_res_layer.1} parent=11 // pred_check
          %p152 = pneg %p104
        $region18: #{plane_res_layer.1} parent=11 // pred_check_branch
          %154 = sbr.rel (%p152) target = $region20
        $region19: #{plane_res_layer.1} parent=11 // pred_region
          _
        $region20: #{plane_res_layer.1} parent=11 // pred_fallthru
          _
      $region12: #{plane_res_layer.1} parent=5 // pred_fallthru
        _
      %p155 = scmp.lt.s32.totalorder %s13, 2
      // Predicated region
      $region21: #{plane_res_layer.1} parent=5 // pred_check
        %p156 = pneg %p155
      $region22: #{plane_res_layer.1} parent=5 // pred_check_branch
        %158 = sbr.rel (%p156) target = $region24
      $region23: #{plane_res_layer.1} parent=5 // pred_region
        // Predicated region
        $region25: #{plane_res_layer.1} parent=23 // pred_check
          %p159 = pneg %p77
        $region26: #{plane_res_layer.1} parent=23 // pred_check_branch
          %161 = sbr.rel (%p159) target = $region28
        $region27: #{plane_res_layer.1} parent=23 // pred_region
          %s162 = smul.u32 2, %s21
          %p163 = scmp.lt.s32.totalorder %s20, 1
          %s164 = scalar_select %p163, %s20, 1
          %p165 = scmp.lt.s32.totalorder %s162, 1
          %s166 = scalar_select %p165, %s162, 1
          %p167 = scmp.lt.s32.totalorder %s22, 0
          %s168 = scalar_select %p167, %s22, 0
          %s169 = sadd.s32 %s168, %s166
          %s170 = smul.addr %s164, 2
          %s171 = sadd.s32 %s169, %s170
          %s172 = smul.addr %s171, 8
          %s173 = scalar_lea.vmem %s1, %s172
          %s174 = smul.u32 2, %s21
        $region28: #{plane_res_layer.1} parent=23 // pred_fallthru
          _
      $region24: #{plane_res_layer.1} parent=5 // pred_fallthru
        _
      %p175 = scmp.le.s32.totalorder 1, %s13
      %p176 = scmp.lt.s32.totalorder %s13, 3
      %p177 = pnand %p175, %p176
      %p178 = pneg %p177
      // Predicated region
      $region29: #{plane_res_layer.1} parent=5 // pred_check
        _
      $region30: #{plane_res_layer.1} parent=5 // pred_check_branch
        %180 = sbr.rel (%p177) target = $region32
      $region31: #{plane_res_layer.1} parent=5 // pred_region
        %s181 = ssub.s32 %s13, 1
        %p182 = pneg %p53
        %p183 = pneg %p50
        %s184 = smul.u32 2, %s24
        %p185 = scmp.lt.s32.totalorder %s23, 1
        %s186 = scalar_select %p185, %s23, 1
        %p187 = scmp.lt.s32.totalorder %s184, 1
        %s188 = scalar_select %p187, %s184, 1
        %p189 = scmp.lt.s32.totalorder %s25, 0
        %s190 = scalar_select %p189, %s25, 0
        %s191 = sadd.s32 %s190, %s188
        %s192 = smul.addr %s186, 2
        %s193 = sadd.s32 %s191, %s192
        %s194 = smul.addr %s193, 8
        %s195 = scalar_lea.vmem %s1, %s194
        %p196 = pneg %p83
        %p197 = pneg %p80
        %p198 = pneg %p104
        %p199 = pneg %p101
        %p200 = pneg %p134
        %p201 = pneg %p131
        %s202 = sand.u32 %s121, 1
        %s203 = scalar_lea.sflag [#allocation4], %s202
        %s204 = sand.u32 %s121, 1
        %s205 = smul.addr %s204, 16
        %s206 = scalar_lea.vmem [#allocation3], %s205
        %s207 = smul.u32 2, %s24
        %p208 = scmp.lt.s32.totalorder %s23, 1
        %s209 = scalar_select %p208, %s23, 1
        %p210 = scmp.lt.s32.totalorder %s207, 1
        %s211 = scalar_select %p210, %s207, 1
        %p212 = scmp.lt.s32.totalorder %s25, 0
        %s213 = scalar_select %p212, %s25, 0
        %s214 = sadd.s32 %s213, %s211
        %s215 = smul.addr %s209, 2
        %s216 = sadd.s32 %s214, %s215
        %s217 = smul.addr %s216, 8
        %s218 = scalar_lea.vmem %s1, %s217
        %s219 = smul.u32 2, %s24
        %s220 = smul.u32 2, %s25
        %v221 = vld [vmem:[%s218] sm:$0xff]
        %v222 = vld [vmem:[%s218 + $0x8] sm:$0xff]
        %v223 = vld [vmem:[%s2] sm:$0xff]
        %v224 = vld [vmem:[%s2 + $0x8] sm:$0xff]
        %v225 = vld [vmem:[%s2 + $0x10] sm:$0xff]
        %v226 = vld [vmem:[%s2 + $0x18] sm:$0xff]
        %v227 = vld [vmem:[%s2 + $0x20] sm:$0xff]
        %v228 = vld [vmem:[%s2 + $0x28] sm:$0xff]
        %vm229 = vcmask 392192
        %v231 = vsel %vm229, %v221, 0
        %v234 = vsel %vm229, %v222, 0
        %236 = vmatprep.subr.mxu0 0.0
        %237 = vmatpush1.msra.mxu0 0.0
        %238 = vmatprep.subr.mxu0 0.0
        %239 = vmatpush1.msra.mxu0 0.0
        %240 = vmatprep.subr.mxu0 0.0
        %241 = vmatpush1.msra.mxu0 0.0
        %242 = vmatprep.subr.mxu0 0.0
        %243 = vmatpush1.msra.mxu0 0.0
        %244 = vmatprep.subr.mxu0 0.0
        %245 = vmatpush1.msra.mxu0 0.0
        %246 = vmatprep.subr.mxu0 0.0
        %247 = vmatpush1.msra.mxu0 0.0
        %248 = vmatprep.subr.mxu0 0.0
        %249 = vmatpush1.msra.mxu0 0.0
        %250 = vmatprep.subr.mxu0 0.0
        %251 = vmatpush1.msra.mxu0 0.0
        %252 = vmatprep.subr.mxu0 0.0
        %253 = vmatpush1.msra.mxu0 0.0
        %254 = vmatprep.subr.mxu0 0.0
        %255 = vmatpush1.msra.mxu0 0.0
        %256 = vmatprep.subr.mxu0 0.0
        %257 = vmatpush1.msra.mxu0 %v228
        %258 = vmatprep.subr.mxu0 0.0
        %259 = vmatpush1.msra.mxu0 %v227
        %260 = vmatprep.subr.mxu0 0.0
        %261 = vmatpush1.msra.mxu0 %v226
        %262 = vmatprep.subr.mxu0 0.0
        %263 = vmatpush1.msra.mxu0 %v225
        %264 = vmatprep.subr.mxu0 0.0
        %265 = vmatpush1.msra.mxu0 %v224
        %266 = vmatprep.subr.mxu0 0.0
        %267 = vmatpush1.msra.mxu0 %v223
        %268 = vmatprep.subr.mxu0 0.0
        %269 = vmatpush2.msra.mxu0 0.0
        %270 = vmatprep.subr.mxu0 0.0
        %271 = vmatpush2.msra.mxu0 0.0
        %272 = vmatprep.subr.mxu0 0.0
        %273 = vmatpush2.msra.mxu0 0.0
        %274 = vmatprep.subr.mxu0 0.0
        %275 = vmatpush2.msra.mxu0 0.0
        %276 = vmatprep.subr.mxu0 0.0
        %277 = vmatpush2.msra.mxu0 0.0
        %278 = vmatprep.subr.mxu0 0.0
        %279 = vmatpush2.msra.mxu0 0.0
        %280 = vmatprep.subr.mxu0 0.0
        %281 = vmatpush2.msra.mxu0 0.0
        %282 = vmatprep.subr.mxu0 0.0
        %283 = vmatpush2.msra.mxu0 0.0
        %284 = vmatprep.subr.mxu0 0.0
        %285 = vmatpush2.msra.mxu0 0.0
        %286 = vmatprep.subr.mxu0 0.0
        %287 = vmatpush2.msra.mxu0 0.0
        %288 = vmatprep.subr.mxu0 0.0
        %289 = vmatpush2.msra.mxu0 0.0
        %290 = vmatprep.subr.mxu0 0.0
        %291 = vmatpush2.msra.mxu0 0.0
        %292 = vmatprep.subr.mxu0 0.0
        %293 = vmatpush2.msra.mxu0 0.0
        %294 = vmatprep.subr.mxu0 0.0
        %295 = vmatpush2.msra.mxu0 0.0
        %296 = vmatprep.subr.mxu0 0.0
        %297 = vmatpush2.msra.mxu0 0.0
        %298 = vmatprep.subr.mxu0 0.0
        %299 = vmatpush2.msra.mxu0 0.0
        %300 = vmatprep.mubr.f32.mxu0 0.0
        %301 = vmatmul.mubr.f32.gmra.mxu0 %v231
        %v302 = vpop.f32.mrf.mxu0
        %v303 = vadd.f32 0.0, %v302
        %v304 = vpop.f32.mrf.mxu0
        %305 = vmatprep.mubr.f32.mxu0 0.0
        %306 = vmatmul.mubr.f32.gmra.mxu0 %v234
        %v307 = vpop.f32.mrf.mxu0
        %v308 = vadd.f32 0.0, %v307
        %v309 = vpop.f32.mrf.mxu0
        %310 = vdwg.mxu0
        %311 = vxpose.xlu0.b32.start [1/16] %v303, 128
        %312 = vxpose.xlu0.b32.cont [2/16] %v308, 128
        %313 = vxpose.xlu0.b32.cont [3/16] 0.0, 128
        %314 = vxpose.xlu0.b32.cont [4/16] 0.0, 128
        %315 = vxpose.xlu0.b32.cont [5/16] 0.0, 128
        %316 = vxpose.xlu0.b32.cont [6/16] 0.0, 128
        %317 = vxpose.xlu0.b32.cont [7/16] 0.0, 128
        %318 = vxpose.xlu0.b32.cont [8/16] 0.0, 128
        %319 = vxpose.xlu0.b32.cont [9/16] 0.0, 128
        %320 = vxpose.xlu0.b32.cont [10/16] 0.0, 128
        %321 = vxpose.xlu0.b32.cont [11/16] 0.0, 128
        %322 = vxpose.xlu0.b32.cont [12/16] 0.0, 128
        %323 = vxpose.xlu0.b32.cont [13/16] 0.0, 128
        %324 = vxpose.xlu0.b32.cont [14/16] 0.0, 128
        %325 = vxpose.xlu0.b32.cont [15/16] 0.0, 128
        %326 = vxpose.xlu0.b32.end [16/16] 0.0, 128
        %v327 = vpop.trf.xlu0
        %v328 = vpop.trf.xlu0
        %v329 = vpop.trf.xlu0
        %v330 = vpop.trf.xlu0
        %v331 = vpop.trf.xlu0
        %v332 = vpop.trf.xlu0
        %v333 = vpop.trf.xlu0
        %v334 = vpop.trf.xlu0
        %v335 = vpop.trf.xlu0
        %v336 = vpop.trf.xlu0
        %v337 = vpop.trf.xlu0
        %v338 = vpop.trf.xlu0
        %v339 = vpop.trf.xlu0
        %v340 = vpop.trf.xlu0
        %v341 = vpop.trf.xlu0
        %v342 = vpop.trf.xlu0
        %s343 = sld [smem:[#allocation2]]
        %v344 = vstv %s343
        %v345 = vadd.f32 %v327, %v344
        %v346 = vadd.f32 %v328, %v344
        %vm347 = vcmask 130048
        %348 = vst.msk [vmem:[%s206] sm:$0xff] %vm347, %v345
        %349 = vst.msk [vmem:[%s206 + $0x8] sm:$0xff] %vm347, %v346
        %s350 = sand.u32 %s121, 1
        %s351 = scalar_lea.sflag [#allocation4], %s350
        %s352 = sand.u32 %s121, 1
        %s353 = smul.addr %s352, 16
        %s354 = scalar_lea.vmem [#allocation3], %s353
        // Predicated region
        $region33: #{plane_res_layer.1} parent=31 // pred_check
          %p355 = pneg %p131
        $region34: #{plane_res_layer.1} parent=31 // pred_check_branch
          %357 = sbr.rel (%p355) target = $region36
        $region35: #{plane_res_layer.1} parent=31 // pred_region
          %s358 = smul.u32 2, %s25
          %s360 = ssub.s32 256, 256
          %361 = vsyncadd %s351, %s360
          %s362 = sadd.s32 %s24, %s358
          %s363 = smul.addr %s23, 2
          %s364 = sadd.s32 %s362, %s363
          %s365 = smul.addr %s364, 128
          %s366 = scalar_lea.hbm %s3, %s365
          %s367 = sshll.u32 %s354, 4
          %s368 = int_to_ptr.vmem [resolvable:$true] %s367
          %373 = dma.vmem_to_hbm [thread:$0]  %s368, 256, %s366, %s351, 128, 128, 8
        $region36: #{plane_res_layer.1} parent=31 // pred_fallthru
          _
      $region32: #{plane_res_layer.1} parent=5 // pred_fallthru
        _
      %p374 = scmp.le.s32.totalorder 2, %s13
      // Predicated region
      $region37: #{plane_res_layer.1} parent=5 // pred_check
        %p375 = pneg %p374
      $region38: #{plane_res_layer.1} parent=5 // pred_check_branch
        %377 = sbr.rel (%p375) target = $region40
      $region39: #{plane_res_layer.1} parent=5 // pred_region
        %s378 = ssub.s32 %s13, 2
        // Predicated region
        $region41: #{plane_res_layer.1} parent=39 // pred_check
          %p379 = pneg %p137
        $region42: #{plane_res_layer.1} parent=39 // pred_check_branch
          %381 = sbr.rel (%p379) target = $region44
        $region43: #{plane_res_layer.1} parent=39 // pred_region
          %s382 = sand.u32 %s122, 1
          %s383 = scalar_lea.sflag [#allocation4], %s382
          %s384 = sand.u32 %s122, 1
          %s385 = smul.addr %s384, 16
          %s386 = scalar_lea.vmem [#allocation3], %s385
          %387 = dma.done %s383, 256
        $region44: #{plane_res_layer.1} parent=39 // pred_fallthru
          _
      $region40: #{plane_res_layer.1} parent=5 // pred_fallthru
        _
    $region6: #{plane_res_layer.1} parent=1 // loop_footer
      %s17 = sadd.s32 1, %s13
    $region7: #{plane_res_layer.1} parent=1 // loop_footer_branch
      %12 = sbr.rel target = $region3
    $region8: #{plane_res_layer.1} parent=1 // loop_exit
      _
    %388 = vsyncpa [#allocation4], 1
    %s389 = scalar_lea.sflag [#allocation4], 1
    %390 = vsyncpa %s389, 1

</llo_original>
